<compile_context>
chip_gen: v6e
topology: v6e:2x2x1
jax: 0.10.0
libtpu: 0.0.40
codegen_flags: <defaults>
</compile_context>

<pallas_src>
import functools

import jax
import jax.numpy as jnp
from jax.experimental import pallas as pl
from jax.experimental.pallas import tpu as pltpu

LANE = 128


def _round_up(v, m):
    return (v + m - 1) // m * m


# ---------------------------------------------------------------------------
# Kernel 1: support = x @ W        (GraphConvolution's torch.mm(input, weight))
# ---------------------------------------------------------------------------
def gcn_project_kernel(x_ref, w_ref, support_ref, *, compute_dtype):
    x = x_ref[...].astype(compute_dtype)
    w = w_ref[...].astype(compute_dtype)
    support_ref[...] = jnp.dot(x, w, preferred_element_type=jnp.float32)


# ---------------------------------------------------------------------------
# Kernel 2: out = relu(adj_tile @ support + b)   (torch.spmm + bias + F.relu)
# ---------------------------------------------------------------------------
def gcn_aggregate_kernel(adj_ref, support_ref, b_ref, out_ref, *, compute_dtype):
    adj = adj_ref[...].astype(compute_dtype)
    sup = support_ref[...].astype(compute_dtype)
    agg = jnp.dot(adj, sup, preferred_element_type=jnp.float32)   # [TILE, H_pad] f32
    out = jnp.maximum(agg + b_ref[...], 0.0)
    # F.dropout is identity in eval mode.
    out_ref[...] = out.astype(out_ref.dtype)


# ---------------------------------------------------------------------------
# Wrapper
# ---------------------------------------------------------------------------
def gcn_forward(x, adj, params, *, tile_rows=128, compute_dtype=jnp.float32):
    N, nfeat = x.shape
    nhid = params["W"].shape[1]
    nhid_pad = _round_up(nhid, LANE)                 # lane-dense output width

    # Zero-pad weight / bias columns so every kernel store is full-lane.
    W = jnp.zeros((nfeat, nhid_pad), jnp.float32).at[:, :nhid].set(params["W"])
    b = jnp.zeros((1, nhid_pad), jnp.float32).at[:, :nhid].set(
        params["b"].reshape(1, nhid))

    tile = min(tile_rows, N)
    assert N % tile == 0 and tile % 8 == 0, "row tile must divide N and be a multiple of 8"
    grid = (N // tile,)

    cparams = pltpu.CompilerParams(
        dimension_semantics=("parallel",),           # split row tiles across TCs
        vmem_limit_bytes=32 * 1024 * 1024,
    )

    # ---- stage 1: per-row-tile projection  support = x @ W -----------------
    support = pl.pallas_call(
        functools.partial(gcn_project_kernel, compute_dtype=compute_dtype),
        out_shape=jax.ShapeDtypeStruct((N, nhid_pad), jnp.float32),
        grid=grid,
        in_specs=[
            pl.BlockSpec((tile, nfeat), lambda i: (i, 0)),       # x row tile
            pl.BlockSpec((nfeat, nhid_pad), lambda i: (0, 0)),   # W (small, un-blocked)
        ],
        out_specs=pl.BlockSpec((tile, nhid_pad), lambda i: (i, 0)),
        compiler_params=cparams,
    )(x, W)

    # ---- stage 2: per-row-tile aggregation  relu(adj @ support + b) --------
    flops = int(2 * N * N * nhid_pad)
    bytes_accessed = int(4 * (N * N + 2 * N * nhid_pad + nhid_pad))
    out = pl.pallas_call(
        functools.partial(gcn_aggregate_kernel, compute_dtype=compute_dtype),
        out_shape=jax.ShapeDtypeStruct((N, nhid_pad), jnp.float32),
        grid=grid,
        in_specs=[
            pl.BlockSpec((tile, N), lambda i: (i, 0)),           # adj row tile (dominant DMA)
            pl.BlockSpec((N, nhid_pad), lambda i: (0, 0)),       # support (resident, small)
            pl.BlockSpec((1, nhid_pad), lambda i: (0, 0)),       # bias
        ],
        out_specs=pl.BlockSpec((tile, nhid_pad), lambda i: (i, 0)),
        compiler_params=cparams,
        cost_estimate=pl.CostEstimate(
            flops=flops, transcendentals=0, bytes_accessed=bytes_accessed),
    )(adj, support, b)

    return out[:, :nhid]                              # drop lane padding


# ---------------------------------------------------------------------------
# Plain-JAX reference (mirrors the PyTorch forward in eval mode)
# ---------------------------------------------------------------------------
def gcn_reference(x, adj, params):
    support = x @ params["W"]
    out = adj @ support + params["b"]
    return jnp.maximum(out, 0.0)


if __name__ == "__main__":
    # Small shapes consistent with the module: N nodes, nfeat input features, nhid hidden.
    N, nfeat, nhid = 256, 96, 32
    dropout = 0.5        # identity in eval mode

    key = jax.random.PRNGKey(0)
    kx, ka, kw, kb = jax.random.split(key, 4)

    x = jax.random.normal(kx, (N, nfeat), dtype=jnp.float32)

    # Random sparse adjacency with self-loops, symmetrically normalized.
    a = (jax.random.uniform(ka, (N, N)) < 0.05).astype(jnp.float32)
    a = jnp.maximum(a, a.T)
    a = jnp.maximum(a, jnp.eye(N, dtype=jnp.float32))
    dinv = 1.0 / jnp.sqrt(jnp.sum(a, axis=1))
    adj = a * dinv[:, None] * dinv[None, :]

    # GraphConvolution.reset_parameters(): uniform(-1/sqrt(out), 1/sqrt(out))
    stdv = 1.0 / (nhid ** 0.5)
    params = {
        "W": jax.random.uniform(kw, (nfeat, nhid), minval=-stdv, maxval=stdv,
                                dtype=jnp.float32),
        "b": jax.random.uniform(kb, (nhid,), minval=-stdv, maxval=stdv,
                                dtype=jnp.float32),
    }

    ref = gcn_reference(x, adj, params)

    # f32 path (bit-faithful to the PyTorch op order)
    out_f32 = jax.block_until_ready(gcn_forward(x, adj, params, tile_rows=64))
    assert out_f32.shape == (N, nhid)
    assert jnp.allclose(out_f32, ref, atol=1e-4, rtol=1e-4), "f32 kernel mismatch vs reference"

    # bf16 MXU-operand path (v6e/v7x fast path; f32 accumulation)
    out_bf16 = jax.block_until_ready(
        gcn_forward(x, adj, params, tile_rows=64, compute_dtype=jnp.bfloat16))
    assert jnp.allclose(out_bf16, ref, atol=5e-2, rtol=5e-2), "bf16 kernel mismatch vs reference"

    print("KERNEL_OK")
</pallas_src>

<mosaic_0001>
module attributes {stable_mosaic.version = 11 : i64} {
  func.func @gcn_project_kernel(%arg0: i32, %arg1: memref<64x96xf32, #tpu.memory_space<vmem>>, %arg2: memref<96x128xf32, #tpu.memory_space<vmem>>, %arg3: memref<64x128xf32, #tpu.memory_space<vmem>>) attributes {dimension_semantics = [#tpu.dimension_semantics<parallel>], iteration_bounds = array<i64: 4>, scalar_prefetch = 0 : i64, scratch_operands = 0 : i64, tpu.core_type = #tpu.core_type<tc>, window_params = [{transform_indices = @transform_0, window_bounds = array<i64: 64, 96>}, {pipeline_mode = #tpu.pipeline_mode<synchronous>, transform_indices = @transform_1, window_bounds = array<i64: 96, 128>}, {transform_indices = @transform_2, window_bounds = array<i64: 64, 128>}]} {
    %c0 = arith.constant 0 : index
    %c0_0 = arith.constant 0 : index
    %0 = vector.load %arg1[%c0, %c0_0] : memref<64x96xf32, #tpu.memory_space<vmem>>, vector<64x96xf32>
    %c0_1 = arith.constant 0 : index
    %c0_2 = arith.constant 0 : index
    %1 = vector.load %arg2[%c0_1, %c0_2] : memref<96x128xf32, #tpu.memory_space<vmem>>, vector<96x128xf32>
    %cst = arith.constant dense<0.000000e+00> : vector<64x128xf32>
    %2 = tpu.matmul %0, %1, %cst {dimension_numbers = #tpu.dot_dimension_numbers<[1], [0], [0], [1], [0, 0, 1, 1], [], []>} : vector<64x96xf32>, vector<96x128xf32>, vector<64x128xf32> -> vector<64x128xf32>
    %c0_3 = arith.constant 0 : index
    %c0_4 = arith.constant 0 : index
    %3 = vector.load %arg3[%c0_3, %c0_4] : memref<64x128xf32, #tpu.memory_space<vmem>>, vector<64x128xf32>
    tpu.vector_store %arg3[%c0_3, %c0_4], %2 {strides = array<i32>} : memref<64x128xf32, #tpu.memory_space<vmem>>, vector<64x128xf32>,
    return
  }
  func.func @transform_0(%arg0: i32) -> (i32, i32) {
    %c0_i32 = arith.constant 0 : i32
    %c0_i32_0 = arith.constant 0 : i32
    return %arg0, %c0_i32 : i32, i32
  }
  func.func @transform_1(%arg0: i32) -> (i32, i32) {
    %c0_i32 = arith.constant 0 : i32
    %c0_i32_0 = arith.constant 0 : i32
    %c0_i32_1 = arith.constant 0 : i32
    return %c0_i32, %c0_i32_0 : i32, i32
  }
  func.func @transform_2(%arg0: i32) -> (i32, i32) {
    %c0_i32 = arith.constant 0 : i32
    %c0_i32_0 = arith.constant 0 : i32
    return %arg0, %c0_i32 : i32, i32
  }
}

</mosaic_0001>

<llo_original>
// kernel: tpu_custom_call.1
$region0: #{tpu_custom_call.1}
  #allocation0 [shape = 'u32[]', space=smem, size = 0x4, offset = 0x4, fixed_abs, tag = 'smem constant byte address 0x4 - core index']
  #allocation1 [shape = 'u32[144,128]{1,0:T(1,128)}', space=vmem, size = 0x12000, scoped, tag = 'internal scratch']
  %s0 = inlined_call_operand.vmem [shape: f32[256,96], index: 0, kind: input, shape index: {}]
  %s1 = inlined_call_operand.vmem [shape: f32[96,128], index: 1, kind: input, shape index: {}]
  %s2 = inlined_call_operand.hbm [shape: f32[256,128], index: 2, kind: output, shape index: {}]
  %s3 = sld [smem:[#allocation0]]
  $region41: #{tpu_custom_call.1} parent=0
    _
  %s5 = ssub.s32 1, %s3
  %s6 = scalar_select 0, %s5, %s3
  $region1: #{tpu_custom_call.1} parent=0
    #allocation2 [shape = 'u8[65536]{0}', space=vmem, size = 0x10000, scoped, tag = 'output window, operand 0']
    #allocation3 [shape = 's32[2]{0}', space=sflag, size = 0x8, scoped, tag = 'scoped memory for tpu_custom_call.1']
    %7 = vsyncpa [#allocation3], 0
    %s8 = scalar_lea.sflag [#allocation3], 1
    %9 = vsyncpa %s8, 0
    loop: start=0, step=1, limit=6
    $region2: #{tpu_custom_call.1} parent=1 // loop_pre_header
      _
    $region3: #{tpu_custom_call.1} parent=1 // loop_header
      %s11 = sphi 0, %s15
      %p12 = scmp.ge.s32.totalorder %s11, 6
      %s21 = sphi 0, %s23
      %s24 = sphi 0, %s21
      %s25 = sphi 0, %s24
      %s41 = sphi 0, %s25
      %s45 = sphi 0, %s45
      %s47 = sphi 0, %s45
      %s48 = sphi 0, %s47
      %s62 = sphi 0, %s48
      %s68 = sphi 0, %s70
      %s71 = sphi 0, %s68
      %s72 = sphi 0, %s71
      %s88 = sphi 0, %s72
    $region4: #{tpu_custom_call.1} parent=1 // loop_header_branch
      %14 = sbr.rel (%p12) target = $region8
    $region5: #{tpu_custom_call.1} parent=1 // loop_body
      %s16 = ssub.s32 %s11, 1
      %s17 = ssub.s32 %s11, 2
      %s18 = sadd.s32 %s11, 1
      %s19 = ssub.s32 %s11, %s18
      %p20 = scmp.eq.s32.totalorder %s19, 0
      %s22 = sadd.s32 %s21, 1
      %s23 = scalar_select %p20, %s21, %s22
      %p26 = pneg %p20
      %p27 = scmp.eq.s32.totalorder %s11, 3
      %p28 = por %p26, %p27
      %p29 = scmp.ne.s32.totalorder %s21, %s24
      %p30 = scmp.eq.s32.totalorder %s11, 0
      %p31 = por %p29, %p30
      %p32 = scmp.ne.s32.totalorder %s21, %s24
      %p33 = scmp.eq.s32.totalorder %s16, 3
      %p34 = por %p32, %p33
      %p35 = scmp.ne.s32.totalorder %s24, %s25
      %p36 = scmp.eq.s32.totalorder %s16, 0
      %p37 = por %p35, %p36
      %p38 = scmp.ne.s32.totalorder %s24, %s25
      %p39 = scmp.eq.s32.totalorder %s17, 3
      %p40 = por %p38, %p39
      %p42 = scmp.ne.s32.totalorder %s25, %s41
      %p43 = scmp.eq.s32.totalorder %s17, 0
      %p44 = por %p42, %p43
      %s46 = sadd.s32 %s45, 1
      %p49 = scmp.eq.s32.totalorder %s11, 3
      %p50 = scmp.ne.s32.totalorder %s45, %s47
      %p51 = scmp.eq.s32.totalorder %s11, 0
      %p52 = por %p50, %p51
      %p53 = scmp.ne.s32.totalorder %s45, %s47
      %p54 = scmp.eq.s32.totalorder %s16, 3
      %p55 = por %p53, %p54
      %p56 = scmp.ne.s32.totalorder %s47, %s48
      %p57 = scmp.eq.s32.totalorder %s16, 0
      %p58 = por %p56, %p57
      %p59 = scmp.ne.s32.totalorder %s47, %s48
      %p60 = scmp.eq.s32.totalorder %s17, 3
      %p61 = por %p59, %p60
      %p63 = scmp.ne.s32.totalorder %s48, %s62
      %p64 = scmp.eq.s32.totalorder %s17, 0
      %p65 = por %p63, %p64
      %s66 = ssub.s32 %s11, %s18
      %p67 = scmp.eq.s32.totalorder %s66, 0
      %s69 = sadd.s32 %s68, 1
      %s70 = scalar_select %p67, %s68, %s69
      %p73 = pneg %p67
      %p74 = scmp.eq.s32.totalorder %s11, 3
      %p75 = por %p73, %p74
      %p76 = scmp.ne.s32.totalorder %s68, %s71
      %p77 = scmp.eq.s32.totalorder %s11, 0
      %p78 = por %p76, %p77
      %p79 = scmp.ne.s32.totalorder %s68, %s71
      %p80 = scmp.eq.s32.totalorder %s16, 3
      %p81 = por %p79, %p80
      %p82 = scmp.ne.s32.totalorder %s71, %s72
      %p83 = scmp.eq.s32.totalorder %s16, 0
      %p84 = por %p82, %p83
      %p85 = scmp.ne.s32.totalorder %s71, %s72
      %p86 = scmp.eq.s32.totalorder %s17, 3
      %p87 = por %p85, %p86
      %p89 = scmp.ne.s32.totalorder %s72, %s88
      %p90 = scmp.eq.s32.totalorder %s17, 0
      %p91 = por %p89, %p90
      %p92 = scmp.le.s32.totalorder 1, %s11
      %p93 = scmp.lt.s32.totalorder %s11, 5
      %p94 = pnand %p92, %p93
      %p95 = pneg %p94
      // Predicated region
      $region9: #{tpu_custom_call.1} parent=5 // pred_check
        _
      $region10: #{tpu_custom_call.1} parent=5 // pred_check_branch
        %97 = sbr.rel (%p94) target = $region12
      $region11: #{tpu_custom_call.1} parent=5 // pred_region
        %s98 = ssub.s32 %s11, 1
        // Predicated region
        $region13: #{tpu_custom_call.1} parent=11 // pred_check
          %p99 = pneg %p58
        $region14: #{tpu_custom_call.1} parent=11 // pred_check_branch
          %101 = sbr.rel (%p99) target = $region16
        $region15: #{tpu_custom_call.1} parent=11 // pred_region
          _
        $region16: #{tpu_custom_call.1} parent=11 // pred_fallthru
          _
      $region12: #{tpu_custom_call.1} parent=5 // pred_fallthru
        _
      %p102 = scmp.lt.s32.totalorder %s11, 4
      // Predicated region
      $region17: #{tpu_custom_call.1} parent=5 // pred_check
        %p103 = pneg %p102
      $region18: #{tpu_custom_call.1} parent=5 // pred_check_branch
        %105 = sbr.rel (%p103) target = $region20
      $region19: #{tpu_custom_call.1} parent=5 // pred_region
        // Predicated region
        $region21: #{tpu_custom_call.1} parent=19 // pred_check
          %p106 = pneg %p31
        $region22: #{tpu_custom_call.1} parent=19 // pred_check_branch
          %108 = sbr.rel (%p106) target = $region24
        $region23: #{tpu_custom_call.1} parent=19 // pred_region
          %s109 = smul.u32 8, %s11
          %p110 = scmp.lt.s32.totalorder %s109, 31
          %s111 = scalar_select %p110, %s109, 31
          %s112 = smul.addr %s111, 8
          %s113 = scalar_lea.vmem %s0, %s112
          %s114 = smul.u32 8, %s11
        $region24: #{tpu_custom_call.1} parent=19 // pred_fallthru
          _
      $region20: #{tpu_custom_call.1} parent=5 // pred_fallthru
        _
      %p115 = scmp.le.s32.totalorder 1, %s11
      %p116 = scmp.lt.s32.totalorder %s11, 5
      %p117 = pnand %p115, %p116
      %p118 = pneg %p117
      // Predicated region
      $region25: #{tpu_custom_call.1} parent=5 // pred_check
        _
      $region26: #{tpu_custom_call.1} parent=5 // pred_check_branch
        %120 = sbr.rel (%p117) target = $region28
      $region27: #{tpu_custom_call.1} parent=5 // pred_region
        %s121 = ssub.s32 %s11, 1
        %s122 = smul.u32 8, %s16
        %p123 = scmp.lt.s32.totalorder %s122, 31
        %s124 = scalar_select %p123, %s122, 31
        %s125 = smul.addr %s124, 8
        %s126 = scalar_lea.vmem %s0, %s125
        %p127 = pneg %p37
        %p128 = pneg %p34
        %p129 = pneg %p58
        %p130 = pneg %p55
        %p131 = pneg %p84
        %p132 = pneg %p81
        %s133 = sand.u32 %s71, 1
        %s134 = scalar_lea.sflag [#allocation3], %s133
        %s135 = sand.u32 %s71, 1
        %s136 = smul.addr %s135, 64
        %s137 = scalar_lea.vmem [#allocation2], %s136
        %s138 = smul.u32 8, %s16
        %p139 = scmp.lt.s32.totalorder %s138, 31
        %s140 = scalar_select %p139, %s138, 31
        %s141 = smul.addr %s140, 8
        %s142 = scalar_lea.vmem %s0, %s141
        %s143 = smul.u32 8, %s16
        %s144 = smul.u32 8, %s16
        %v145 = vld [vmem:[%s142] sm:$0xff]
        %v146 = vld [vmem:[%s142 + $0x8] sm:$0xff]
        %v147 = vld [vmem:[%s142 + $0x10] sm:$0xff]
        %v148 = vld [vmem:[%s142 + $0x18] sm:$0xff]
        %v149 = vld [vmem:[%s142 + $0x20] sm:$0xff]
        %v150 = vld [vmem:[%s142 + $0x28] sm:$0xff]
        %v151 = vld [vmem:[%s142 + $0x30] sm:$0xff]
        %v152 = vld [vmem:[%s142 + $0x38] sm:$0xff]
        %v153 = vld [vmem:[%s1] sm:$0xff]
        %v154 = vld [vmem:[%s1 + $0x8] sm:$0xff]
        %v155 = vld [vmem:[%s1 + $0x10] sm:$0xff]
        %v156 = vld [vmem:[%s1 + $0x18] sm:$0xff]
        %v157 = vld [vmem:[%s1 + $0x20] sm:$0xff]
        %v158 = vld [vmem:[%s1 + $0x28] sm:$0xff]
        %v159 = vld [vmem:[%s1 + $0x30] sm:$0xff]
        %v160 = vld [vmem:[%s1 + $0x38] sm:$0xff]
        %v161 = vld [vmem:[%s1 + $0x40] sm:$0xff]
        %v162 = vld [vmem:[%s1 + $0x48] sm:$0xff]
        %v163 = vld [vmem:[%s1 + $0x50] sm:$0xff]
        %v164 = vld [vmem:[%s1 + $0x58] sm:$0xff]
        %vm165 = vcmask 785408
        %v167 = vsel %vm165, %v145, 0
        %v170 = vsel %vm165, %v146, 0
        %v173 = vsel %vm165, %v147, 0
        %v176 = vsel %vm165, %v148, 0
        %v179 = vsel %vm165, %v149, 0
        %v182 = vsel %vm165, %v150, 0
        %v185 = vsel %vm165, %v151, 0
        %v188 = vsel %vm165, %v152, 0
        %190 = vmatprep.subr.mxu0 0.0
        %191 = vmatpush1.msra.mxu0 0.0
        %192 = vmatprep.subr.mxu0 0.0
        %193 = vmatpush1.msra.mxu0 0.0
        %194 = vmatprep.subr.mxu0 0.0
        %195 = vmatpush1.msra.mxu0 0.0
        %196 = vmatprep.subr.mxu0 0.0
        %197 = vmatpush1.msra.mxu0 0.0
        %198 = vmatprep.subr.mxu0 0.0
        %199 = vmatpush1.msra.mxu0 %v164
        %200 = vmatprep.subr.mxu0 0.0
        %201 = vmatpush1.msra.mxu0 %v163
        %202 = vmatprep.subr.mxu0 0.0
        %203 = vmatpush1.msra.mxu0 %v162
        %204 = vmatprep.subr.mxu0 0.0
        %205 = vmatpush1.msra.mxu0 %v161
        %206 = vmatprep.subr.mxu0 0.0
        %207 = vmatpush1.msra.mxu0 %v160
        %208 = vmatprep.subr.mxu0 0.0
        %209 = vmatpush1.msra.mxu0 %v159
        %210 = vmatprep.subr.mxu0 0.0
        %211 = vmatpush1.msra.mxu0 %v158
        %212 = vmatprep.subr.mxu0 0.0
        %213 = vmatpush1.msra.mxu0 %v157
        %214 = vmatprep.subr.mxu0 0.0
        %215 = vmatpush1.msra.mxu0 %v156
        %216 = vmatprep.subr.mxu0 0.0
        %217 = vmatpush1.msra.mxu0 %v155
        %218 = vmatprep.subr.mxu0 0.0
        %219 = vmatpush1.msra.mxu0 %v154
        %220 = vmatprep.subr.mxu0 0.0
        %221 = vmatpush1.msra.mxu0 %v153
        %222 = vmatprep.subr.mxu0 0.0
        %223 = vmatpush2.msra.mxu0 0.0
        %224 = vmatprep.subr.mxu0 0.0
        %225 = vmatpush2.msra.mxu0 0.0
        %226 = vmatprep.subr.mxu0 0.0
        %227 = vmatpush2.msra.mxu0 0.0
        %228 = vmatprep.subr.mxu0 0.0
        %229 = vmatpush2.msra.mxu0 0.0
        %230 = vmatprep.subr.mxu0 0.0
        %231 = vmatpush2.msra.mxu0 0.0
        %232 = vmatprep.subr.mxu0 0.0
        %233 = vmatpush2.msra.mxu0 0.0
        %234 = vmatprep.subr.mxu0 0.0
        %235 = vmatpush2.msra.mxu0 0.0
        %236 = vmatprep.subr.mxu0 0.0
        %237 = vmatpush2.msra.mxu0 0.0
        %238 = vmatprep.subr.mxu0 0.0
        %239 = vmatpush2.msra.mxu0 0.0
        %240 = vmatprep.subr.mxu0 0.0
        %241 = vmatpush2.msra.mxu0 0.0
        %242 = vmatprep.subr.mxu0 0.0
        %243 = vmatpush2.msra.mxu0 0.0
        %244 = vmatprep.subr.mxu0 0.0
        %245 = vmatpush2.msra.mxu0 0.0
        %246 = vmatprep.subr.mxu0 0.0
        %247 = vmatpush2.msra.mxu0 0.0
        %248 = vmatprep.subr.mxu0 0.0
        %249 = vmatpush2.msra.mxu0 0.0
        %250 = vmatprep.subr.mxu0 0.0
        %251 = vmatpush2.msra.mxu0 0.0
        %252 = vmatprep.subr.mxu0 0.0
        %253 = vmatpush2.msra.mxu0 0.0
        %254 = vmatprep.mubr.f32.mxu0 0.0
        %255 = vmatmul.mubr.f32.gmra.mxu0 %v167
        %v256 = vpop.f32.mrf.mxu0
        %v257 = vadd.f32 0.0, %v256
        %v258 = vpop.f32.mrf.mxu0
        %259 = vmatprep.mubr.f32.mxu0 0.0
        %260 = vmatmul.mubr.f32.gmra.mxu0 %v170
        %v261 = vpop.f32.mrf.mxu0
        %v262 = vadd.f32 0.0, %v261
        %v263 = vpop.f32.mrf.mxu0
        %264 = vmatprep.mubr.f32.mxu0 0.0
        %265 = vmatmul.mubr.f32.gmra.mxu0 %v173
        %v266 = vpop.f32.mrf.mxu0
        %v267 = vadd.f32 0.0, %v266
        %v268 = vpop.f32.mrf.mxu0
        %269 = vmatprep.mubr.f32.mxu0 0.0
        %270 = vmatmul.mubr.f32.gmra.mxu0 %v176
        %v271 = vpop.f32.mrf.mxu0
        %v272 = vadd.f32 0.0, %v271
        %v273 = vpop.f32.mrf.mxu0
        %274 = vmatprep.mubr.f32.mxu0 0.0
        %275 = vmatmul.mubr.f32.gmra.mxu0 %v179
        %v276 = vpop.f32.mrf.mxu0
        %v277 = vadd.f32 0.0, %v276
        %v278 = vpop.f32.mrf.mxu0
        %279 = vmatprep.mubr.f32.mxu0 0.0
        %280 = vmatmul.mubr.f32.gmra.mxu0 %v182
        %v281 = vpop.f32.mrf.mxu0
        %v282 = vadd.f32 0.0, %v281
        %v283 = vpop.f32.mrf.mxu0
        %284 = vmatprep.mubr.f32.mxu0 0.0
        %285 = vmatmul.mubr.f32.gmra.mxu0 %v185
        %v286 = vpop.f32.mrf.mxu0
        %v287 = vadd.f32 0.0, %v286
        %v288 = vpop.f32.mrf.mxu0
        %289 = vmatprep.mubr.f32.mxu0 0.0
        %290 = vmatmul.mubr.f32.gmra.mxu0 %v188
        %v291 = vpop.f32.mrf.mxu0
        %v292 = vadd.f32 0.0, %v291
        %v293 = vpop.f32.mrf.mxu0
        %294 = vdwg.mxu0
        %295 = vst [vmem:[%s137] sm:$0xff] %v257
        %296 = vst [vmem:[%s137 + $0x8] sm:$0xff] %v262
        %297 = vst [vmem:[%s137 + $0x10] sm:$0xff] %v267
        %298 = vst [vmem:[%s137 + $0x18] sm:$0xff] %v272
        %299 = vst [vmem:[%s137 + $0x20] sm:$0xff] %v277
        %300 = vst [vmem:[%s137 + $0x28] sm:$0xff] %v282
        %301 = vst [vmem:[%s137 + $0x30] sm:$0xff] %v287
        %302 = vst [vmem:[%s137 + $0x38] sm:$0xff] %v292
        %s303 = sand.u32 %s71, 1
        %s304 = scalar_lea.sflag [#allocation3], %s303
        %s305 = sand.u32 %s71, 1
        %s306 = smul.addr %s305, 64
        %s307 = scalar_lea.vmem [#allocation2], %s306
        // Predicated region
        $region29: #{tpu_custom_call.1} parent=27 // pred_check
          %p308 = pneg %p81
        $region30: #{tpu_custom_call.1} parent=27 // pred_check_branch
          %310 = sbr.rel (%p308) target = $region32
        $region31: #{tpu_custom_call.1} parent=27 // pred_region
          %s311 = smul.u32 8, %s16
          %s313 = ssub.s32 1024, 1024
          %314 = vsyncadd %s304, %s313
          %s315 = smul.addr %s311, 128
          %s316 = scalar_lea.hbm %s2, %s315
          %s317 = sshll.u32 %s307, 4
          %s318 = int_to_ptr.vmem [resolvable:$true] %s317
          %323 = dma.vmem_to_hbm [thread:$0]  %s318, 1024, %s316, %s304, 128, 128, 8
        $region32: #{tpu_custom_call.1} parent=27 // pred_fallthru
          _
      $region28: #{tpu_custom_call.1} parent=5 // pred_fallthru
        _
      %p324 = scmp.le.s32.totalorder 2, %s11
      // Predicated region
      $region33: #{tpu_custom_call.1} parent=5 // pred_check
        %p325 = pneg %p324
      $region34: #{tpu_custom_call.1} parent=5 // pred_check_branch
        %327 = sbr.rel (%p325) target = $region36
      $region35: #{tpu_custom_call.1} parent=5 // pred_region
        %s328 = ssub.s32 %s11, 2
        // Predicated region
        $region37: #{tpu_custom_call.1} parent=35 // pred_check
          %p329 = pneg %p87
        $region38: #{tpu_custom_call.1} parent=35 // pred_check_branch
          %331 = sbr.rel (%p329) target = $region40
        $region39: #{tpu_custom_call.1} parent=35 // pred_region
          %s332 = sand.u32 %s72, 1
          %s333 = scalar_lea.sflag [#allocation3], %s332
          %s334 = sand.u32 %s72, 1
          %s335 = smul.addr %s334, 64
          %s336 = scalar_lea.vmem [#allocation2], %s335
          %337 = dma.done %s333, 1024
        $region40: #{tpu_custom_call.1} parent=35 // pred_fallthru
          _
      $region36: #{tpu_custom_call.1} parent=5 // pred_fallthru
        _
    $region6: #{tpu_custom_call.1} parent=1 // loop_footer
      %s15 = sadd.s32 1, %s11
    $region7: #{tpu_custom_call.1} parent=1 // loop_footer_branch
      %10 = sbr.rel target = $region3
    $region8: #{tpu_custom_call.1} parent=1 // loop_exit
      _
    %338 = vsyncpa [#allocation3], 1
    %s339 = scalar_lea.sflag [#allocation3], 1
    %340 = vsyncpa %s339, 1

</llo_original>
